<compile_context>
chip_gen: v5e
topology: v5e:2x2
jax: 0.10.0
libtpu: 0.0.40
codegen_flags: <defaults>
</compile_context>

<pallas_src>
import jax
import jax.numpy as jnp
import numpy as np
from jax.experimental import pallas as pl
from jax.experimental.pallas import tpu as pltpu


# --------------------------------------------------------------------------
# Pallas kernel (channel-major, voxel axis on lanes):
#   h   = W_gx @ [g; x] + b_gx        (fused folded Conv3d(1x1x1)+BN, (F_int, TM))
#   p   = relu(h)
#   s   = sum_k wp[k] * p[k, :] + bp  (VPU/XLU path instead of a 1-row matmul)
#   psi = sigmoid(s)                  ((1, TM), lane dense)
#   out = x * psi                     (sublane-broadcast gate)
# --------------------------------------------------------------------------
def _attn_gate_kernel(g_ref, x_ref, w_gx_ref, b_gx_ref, wp_ref, bp_ref, o_ref):
    g_blk = g_ref[...].astype(jnp.float32)                  # (F_g, TM)
    x_blk = x_ref[...].astype(jnp.float32)                  # (F_l, TM)

    gx = jnp.concatenate([g_blk, x_blk], axis=0)            # (F_g+F_l, TM)
    h = jnp.dot(w_gx_ref[...], gx,
                preferred_element_type=jnp.float32) + b_gx_ref[...]   # (F_int, TM)
    p = jnp.maximum(h, 0.0)                                 # ReLU

    # psi branch: lane-dense VPU multiply + sublane (XLU) reduction; avoids a
    # 1-row MXU matmul and keeps psi as a (1, TM) lane-dense vector.
    s = jnp.sum(wp_ref[...] * p, axis=0, keepdims=True) + bp_ref[...]  # (1, TM)
    psi = jax.nn.sigmoid(s)

    o_ref[...] = (x_blk * psi).astype(o_ref.dtype)          # gate x, (F_l, TM)


def attention_gate_pallas(g3, x3, w_gx, b_gx, wp_col, bp, *, tm=2048):
    """g3: (N, F_g, M), x3: (N, F_l, M)  ->  (N, F_l, M).

    w_gx: (F_int, F_g+F_l) fused folded weights, b_gx: (F_int, 1),
    wp_col: (F_int, 1), bp: (1, 1).
    """
    N, F_g, M = g3.shape
    F_l = x3.shape[1]
    F_int = w_gx.shape[0]

    # Lane-dense tile along the voxel axis; clamp for small volumes and pad the
    # ragged tail (padded columns are independent per-voxel work -> harmless).
    tm = min(tm, pl.cdiv(M, 128) * 128)
    Mp = pl.cdiv(M, tm) * tm
    if Mp != M:
        pad = Mp - M
        g3 = jnp.pad(g3, ((0, 0), (0, 0), (0, pad)))
        x3 = jnp.pad(x3, ((0, 0), (0, 0), (0, pad)))

    full = lambda n, m: (0, 0)   # small weights/biases: one resident block
    out3 = pl.pallas_call(
        _attn_gate_kernel,
        out_shape=jax.ShapeDtypeStruct((N, F_l, Mp), x3.dtype),
        grid_spec=pltpu.PrefetchScalarGridSpec(
            num_scalar_prefetch=0,
            grid=(N, Mp // tm),
            in_specs=[
                pl.BlockSpec((None, F_g, tm), lambda n, m: (n, 0, m)),  # g tile
                pl.BlockSpec((None, F_l, tm), lambda n, m: (n, 0, m)),  # x tile
                pl.BlockSpec((F_int, F_g + F_l), full),                 # W_gx (fused)
                pl.BlockSpec((F_int, 1), full),                         # b_gx
                pl.BlockSpec((F_int, 1), full),                         # w_psi
                pl.BlockSpec((1, 1), full),                             # b_psi
            ],
            out_specs=pl.BlockSpec((None, F_l, tm), lambda n, m: (n, 0, m)),
        ),
        compiler_params=pltpu.CompilerParams(
            dimension_semantics=("parallel", "parallel")),
    )(g3, x3, w_gx, b_gx, wp_col, bp)

    if Mp != M:
        out3 = out3[:, :, :M]
    return out3


# --------------------------------------------------------------------------
# Parameter setup (deterministic) and BN folding (plain JAX glue)
# --------------------------------------------------------------------------
def fold_conv_bn(w, b, gamma, beta, mean, var, eps=1e-5):
    """Fold eval-mode BatchNorm into a 1x1x1 conv.
    w: (C_out, C_in), b: (C_out,).  Returns (C_out, C_in), (C_out, 1)."""
    scale = gamma / jnp.sqrt(var + eps)                  # (C_out,)
    w_f = w * scale[:, None]                             # (C_out, C_in)
    b_f = scale * (b - mean) + beta                      # (C_out,)
    return w_f.astype(jnp.float32), b_f[:, None].astype(jnp.float32)


def make_params(key, F_g, F_l, F_int):
    ks = jax.random.split(key, 14)
    p = {}
    # W_g branch
    p["wg"] = jax.random.normal(ks[0], (F_int, F_g), jnp.float32) * 0.2
    p["bg"] = jax.random.normal(ks[1], (F_int,), jnp.float32) * 0.1
    p["g_gamma"] = 1.0 + 0.1 * jax.random.normal(ks[2], (F_int,), jnp.float32)
    p["g_beta"] = 0.1 * jax.random.normal(ks[3], (F_int,), jnp.float32)
    p["g_mean"] = 0.05 * jax.random.normal(ks[4], (F_int,), jnp.float32)
    p["g_var"] = 1.0 + 0.1 * jax.random.uniform(ks[5], (F_int,), jnp.float32)
    # W_x branch
    p["wx"] = jax.random.normal(ks[6], (F_int, F_l), jnp.float32) * 0.2
    p["bx"] = jax.random.normal(ks[7], (F_int,), jnp.float32) * 0.1
    p["x_gamma"] = 1.0 + 0.1 * jax.random.normal(ks[8], (F_int,), jnp.float32)
    p["x_beta"] = 0.1 * jax.random.normal(ks[9], (F_int,), jnp.float32)
    p["x_mean"] = 0.05 * jax.random.normal(ks[10], (F_int,), jnp.float32)
    p["x_var"] = 1.0 + 0.1 * jax.random.uniform(ks[11], (F_int,), jnp.float32)
    # psi branch (F_int -> 1)
    p["wp"] = jax.random.normal(ks[12], (1, F_int), jnp.float32) * 0.2
    p["bp"] = jax.random.normal(ks[13], (1,), jnp.float32) * 0.1
    p["p_gamma"] = jnp.array([1.05], jnp.float32)
    p["p_beta"] = jnp.array([0.02], jnp.float32)
    p["p_mean"] = jnp.array([0.01], jnp.float32)
    p["p_var"] = jnp.array([1.1], jnp.float32)
    return p


def _folded_weights(params):
    wg, bg = fold_conv_bn(params["wg"], params["bg"], params["g_gamma"],
                          params["g_beta"], params["g_mean"], params["g_var"])
    wx, bx = fold_conv_bn(params["wx"], params["bx"], params["x_gamma"],
                          params["x_beta"], params["x_mean"], params["x_var"])
    wp, bp = fold_conv_bn(params["wp"], params["bp"], params["p_gamma"],
                          params["p_beta"], params["p_mean"], params["p_var"])
    return wg, bg, wx, bx, wp, bp


def attention_block_3d(g, x, params, *, tm=2048):
    """g: (N, F_g, D, H, W), x: (N, F_l, D, H, W) -> (N, F_l, D, H, W)."""
    N, F_g, D, H, W = g.shape
    F_l = x.shape[1]
    M = D * H * W

    # NCDHW is already channel-major per batch: pure reshapes, no HBM transpose.
    g3 = g.reshape(N, F_g, M)
    x3 = x.reshape(N, F_l, M)

    wg, bg, wx, bx, wp, bp = _folded_weights(params)
    w_gx = jnp.concatenate([wg, wx], axis=1)   # (F_int, F_g+F_l)
    b_gx = bg + bx                             # (F_int, 1)
    wp_col = jnp.transpose(wp)                 # (F_int, 1)

    out3 = attention_gate_pallas(g3, x3, w_gx, b_gx, wp_col, bp, tm=tm)
    return out3.reshape(N, F_l, D, H, W)


def attention_block_3d_ref(g, x, params):
    """Pure-JAX reference (eval-mode BN), NCDHW in/out, unfused branches."""
    wg, bg, wx, bx, wp, bp = _folded_weights(params)
    N, F_g, D, H, W = g.shape
    F_l = x.shape[1]
    gm = g.reshape(N, F_g, -1)
    xm = x.reshape(N, F_l, -1)
    g1 = jnp.einsum("oc,ncm->nom", wg, gm) + bg[None]
    x1 = jnp.einsum("oc,ncm->nom", wx, xm) + bx[None]
    p = jnp.maximum(g1 + x1, 0.0)
    psi = jax.nn.sigmoid(jnp.einsum("oc,ncm->nom", wp, p) + bp[None])
    out = xm * psi
    return out.reshape(N, F_l, D, H, W)


if __name__ == "__main__":
    # Small shapes consistent with the module: F_g = F_l = 8, F_int = 16.
    N, F_g, F_l, F_int = 2, 8, 8, 16
    D = H = W = 8

    key = jax.random.PRNGKey(0)
    kg, kx, kp = jax.random.split(key, 3)
    g = jax.random.normal(kg, (N, F_g, D, H, W), jnp.float32)
    x = jax.random.normal(kx, (N, F_l, D, H, W), jnp.float32)
    params = make_params(kp, F_g, F_l, F_int)

    out = jax.block_until_ready(attention_block_3d(g, x, params))
    ref = jax.block_until_ready(attention_block_3d_ref(g, x, params))
    np.testing.assert_allclose(np.asarray(out), np.asarray(ref),
                               rtol=1e-5, atol=1e-5)
    assert out.shape == (N, F_l, D, H, W)
    print("KERNEL_OK")
</pallas_src>

<mosaic_0001>
module attributes {stable_mosaic.version = 11 : i64} {
  func.func @_attn_gate_kernel(%arg0: i32, %arg1: i32, %arg2: memref<1x8x512xf32, #tpu.memory_space<vmem>>, %arg3: memref<1x8x512xf32, #tpu.memory_space<vmem>>, %arg4: memref<16x16xf32, #tpu.memory_space<vmem>>, %arg5: memref<16x1xf32, #tpu.memory_space<vmem>>, %arg6: memref<16x1xf32, #tpu.memory_space<vmem>>, %arg7: memref<1x1xf32, #tpu.memory_space<vmem>>, %arg8: memref<1x8x512xf32, #tpu.memory_space<vmem>>) attributes {dimension_semantics = [#tpu.dimension_semantics<parallel>, #tpu.dimension_semantics<parallel>], iteration_bounds = array<i64: 2, 1>, scalar_prefetch = 0 : i64, scratch_operands = 0 : i64, tpu.core_type = #tpu.core_type<tc>, window_params = [{transform_indices = @transform_0, window_bounds = array<i64: 1, 8, 512>}, {transform_indices = @transform_1, window_bounds = array<i64: 1, 8, 512>}, {pipeline_mode = #tpu.pipeline_mode<synchronous>, transform_indices = @transform_2, window_bounds = array<i64: 16, 16>}, {pipeline_mode = #tpu.pipeline_mode<synchronous>, transform_indices = @transform_3, window_bounds = array<i64: 16, 1>}, {pipeline_mode = #tpu.pipeline_mode<synchronous>, transform_indices = @transform_4, window_bounds = array<i64: 16, 1>}, {pipeline_mode = #tpu.pipeline_mode<synchronous>, transform_indices = @transform_5, window_bounds = array<i64: 1, 1>}, {transform_indices = @transform_6, window_bounds = array<i64: 1, 8, 512>}]} {
    %c0 = arith.constant 0 : index
    %c0_0 = arith.constant 0 : index
    %c0_1 = arith.constant 0 : index
    %0 = vector.load %arg2[%c0, %c0_0, %c0_1] : memref<1x8x512xf32, #tpu.memory_space<vmem>>, vector<1x8x512xf32>
    %1 = vector.shape_cast %0 : vector<1x8x512xf32> to vector<8x512xf32>
    %c0_2 = arith.constant 0 : index
    %c0_3 = arith.constant 0 : index
    %c0_4 = arith.constant 0 : index
    %2 = vector.load %arg3[%c0_2, %c0_3, %c0_4] : memref<1x8x512xf32, #tpu.memory_space<vmem>>, vector<1x8x512xf32>
    %3 = vector.shape_cast %2 : vector<1x8x512xf32> to vector<8x512xf32>
    %4 = tpu.concatenate %1, %3 in 0 : vector<8x512xf32>, vector<8x512xf32> -> vector<16x512xf32>
    %c0_5 = arith.constant 0 : index
    %c0_6 = arith.constant 0 : index
    %5 = vector.load %arg4[%c0_5, %c0_6] : memref<16x16xf32, #tpu.memory_space<vmem>>, vector<16x16xf32>
    %cst = arith.constant dense<0.000000e+00> : vector<16x512xf32>
    %6 = tpu.matmul %5, %4, %cst {dimension_numbers = #tpu.dot_dimension_numbers<[1], [0], [0], [1], [0, 0, 1, 1], [], []>} : vector<16x16xf32>, vector<16x512xf32>, vector<16x512xf32> -> vector<16x512xf32>
    %c0_7 = arith.constant 0 : index
    %c0_8 = arith.constant 0 : index
    %7 = vector.load %arg5[%c0_7, %c0_8] : memref<16x1xf32, #tpu.memory_space<vmem>>, vector<16x1xf32>
    %8 = vector.broadcast %7 : vector<16x1xf32> to vector<16x512xf32>
    %9 = arith.addf %6, %8 : vector<16x512xf32>
    %cst_9 = arith.constant 0.000000e+00 : f32
    %10 = vector.broadcast %cst_9 : f32 to vector<16x512xf32>
    %11 = arith.maximumf %9, %10 : vector<16x512xf32>
    %c0_10 = arith.constant 0 : index
    %c0_11 = arith.constant 0 : index
    %12 = vector.load %arg6[%c0_10, %c0_11] : memref<16x1xf32, #tpu.memory_space<vmem>>, vector<16x1xf32>
    %13 = vector.broadcast %12 : vector<16x1xf32> to vector<16x512xf32>
    %14 = arith.mulf %13, %11 : vector<16x512xf32>
    %cst_12 = arith.constant dense<0.000000e+00> : vector<512xf32>
    %15 = vector.multi_reduction <add>, %14, %cst_12 [0] : vector<16x512xf32> to vector<512xf32>
    %16 = vector.shape_cast %15 : vector<512xf32> to vector<1x512xf32>
    %c0_13 = arith.constant 0 : index
    %c0_14 = arith.constant 0 : index
    %17 = vector.load %arg7[%c0_13, %c0_14] : memref<1x1xf32, #tpu.memory_space<vmem>>, vector<1x1xf32>
    %18 = vector.broadcast %17 : vector<1x1xf32> to vector<1x512xf32>
    %19 = arith.addf %16, %18 : vector<1x512xf32>
    %20 = arith.negf %19 : vector<1x512xf32>
    %21 = math.exp %20 : vector<1x512xf32>
    %cst_15 = arith.constant 1.000000e+00 : f32
    %22 = vector.broadcast %cst_15 : f32 to vector<1x512xf32>
    %23 = arith.addf %22, %21 : vector<1x512xf32>
    %24 = arith.divf %22, %23 : vector<1x512xf32>
    %25 = vector.broadcast %24 : vector<1x512xf32> to vector<8x512xf32>
    %26 = arith.mulf %3, %25 : vector<8x512xf32>
    %c0_16 = arith.constant 0 : index
    %c0_17 = arith.constant 0 : index
    %c0_18 = arith.constant 0 : index
    %27 = vector.load %arg8[%c0_16, %c0_17, %c0_18] : memref<1x8x512xf32, #tpu.memory_space<vmem>>, vector<1x8x512xf32>
    %28 = vector.shape_cast %27 : vector<1x8x512xf32> to vector<8x512xf32>
    %29 = vector.shape_cast %26 : vector<8x512xf32> to vector<1x8x512xf32>
    tpu.vector_store %arg8[%c0_16, %c0_17, %c0_18], %29 {strides = array<i32>} : memref<1x8x512xf32, #tpu.memory_space<vmem>>, vector<1x8x512xf32>,
    return
  }
  func.func @transform_0(%arg0: i32, %arg1: i32) -> (i32, i32, i32) {
    %c0_i32 = arith.constant 0 : i32
    %c0_i32_0 = arith.constant 0 : i32
    return %arg0, %c0_i32, %arg1 : i32, i32, i32
  }
  func.func @transform_1(%arg0: i32, %arg1: i32) -> (i32, i32, i32) {
    %c0_i32 = arith.constant 0 : i32
    %c0_i32_0 = arith.constant 0 : i32
    return %arg0, %c0_i32, %arg1 : i32, i32, i32
  }
  func.func @transform_2(%arg0: i32, %arg1: i32) -> (i32, i32) {
    %c0_i32 = arith.constant 0 : i32
    %c0_i32_0 = arith.constant 0 : i32
    %c0_i32_1 = arith.constant 0 : i32
    return %c0_i32, %c0_i32_0 : i32, i32
  }
  func.func @transform_3(%arg0: i32, %arg1: i32) -> (i32, i32) {
    %c0_i32 = arith.constant 0 : i32
    %c0_i32_0 = arith.constant 0 : i32
    %c0_i32_1 = arith.constant 0 : i32
    return %c0_i32, %c0_i32_0 : i32, i32
  }
  func.func @transform_4(%arg0: i32, %arg1: i32) -> (i32, i32) {
    %c0_i32 = arith.constant 0 : i32
    %c0_i32_0 = arith.constant 0 : i32
    %c0_i32_1 = arith.constant 0 : i32
    return %c0_i32, %c0_i32_0 : i32, i32
  }
  func.func @transform_5(%arg0: i32, %arg1: i32) -> (i32, i32) {
    %c0_i32 = arith.constant 0 : i32
    %c0_i32_0 = arith.constant 0 : i32
    %c0_i32_1 = arith.constant 0 : i32
    return %c0_i32, %c0_i32_0 : i32, i32
  }
  func.func @transform_6(%arg0: i32, %arg1: i32) -> (i32, i32, i32) {
    %c0_i32 = arith.constant 0 : i32
    %c0_i32_0 = arith.constant 0 : i32
    return %arg0, %c0_i32, %arg1 : i32, i32, i32
  }
}

</mosaic_0001>

<llo_original>
// kernel: tpu_custom_call.1
$region0: #{tpu_custom_call.1}
  #allocation0 [shape = 'u32[]', space=smem, size = 0x4, offset = 0x4, fixed_abs, tag = 'smem constant byte address 0x4 - core index']
  #allocation1 [shape = 'u32[72,128]{1,0:T(1,128)}', space=vmem, size = 0x9000, scoped, tag = 'internal scratch']
  #allocation2 [shape = 'f32[1,1]{1,0:T(1,128)S(1)}', space=vmem, size = 0x200, scoped, tag = 'scoped memory for tpu_custom_call.1']
  %s0 = inlined_call_operand.hbm [shape: f32[2,8,512], index: 0, kind: input, shape index: {}]
  %s1 = inlined_call_operand.hbm [shape: f32[2,8,512], index: 1, kind: input, shape index: {}]
  %s2 = inlined_call_operand.vmem [shape: f32[16,16], index: 2, kind: input, shape index: {}]
  %s3 = inlined_call_operand.vmem [shape: f32[16,1], index: 3, kind: input, shape index: {}]
  %s4 = inlined_call_operand.vmem [shape: f32[16,1], index: 4, kind: input, shape index: {}]
  %s5 = inlined_call_operand.<no memory space> [shape: f32[1,1], index: 5, kind: input, shape index: {}]
  %s6 = inlined_call_operand.hbm [shape: f32[2,8,512], index: 6, kind: output, shape index: {}]
  %s7 = sld [smem:[#allocation0]]
  $region65: #{tpu_custom_call.1} parent=0
    _
  %s9 = ssub.s32 1, %s7
  %s10 = scalar_select 0, %s9, %s7
  %v11 = vstv %s5
  %12 = vst [vmem:[#allocation2] sm:$0x1] %v11
  $region1: #{tpu_custom_call.1} parent=0
    #allocation3 [shape = 'u8[32768]{0}', space=vmem, size = 0x8000, scoped, tag = 'input window, operand 0']
    #allocation4 [shape = 's32[2]{0}', space=sflag, size = 0x8, scoped, tag = 'scoped memory for tpu_custom_call.1']
    #allocation5 [shape = 's32[2]{0}', space=sflag, size = 0x8, scoped, tag = 'scoped memory for tpu_custom_call.1']
    #allocation6 [shape = 'u8[32768]{0}', space=vmem, size = 0x8000, scoped, tag = 'input window, operand 1']
    #allocation7 [shape = 's32[2]{0}', space=sflag, size = 0x8, scoped, tag = 'scoped memory for tpu_custom_call.1']
    #allocation8 [shape = 'u8[32768]{0}', space=vmem, size = 0x8000, scoped, tag = 'output window, operand 0']
    %13 = vsyncpa [#allocation4], 0
    %s14 = scalar_lea.sflag [#allocation4], 1
    %15 = vsyncpa %s14, 0
    %16 = vsyncpa [#allocation7], 0
    %s17 = scalar_lea.sflag [#allocation7], 1
    %18 = vsyncpa %s17, 0
    %19 = vsyncpa [#allocation5], 0
    %s20 = scalar_lea.sflag [#allocation5], 1
    %21 = vsyncpa %s20, 0
    loop: start=0, step=1, limit=4
    $region2: #{tpu_custom_call.1} parent=1 // loop_pre_header
      _
    $region3: #{tpu_custom_call.1} parent=1 // loop_header
      %s23 = sphi 0, %s27
      %p24 = scmp.ge.s32.totalorder %s23, 4
      %s30 = sphi 0, %s42
      %s31 = sphi 0, %s38
      %s32 = sphi 0, %s30
      %s33 = sphi 0, %s31
      %s34 = sphi 0, %s32
      %s35 = sphi 0, %s33
      %s47 = sphi 0, %s49
      %s50 = sphi 0, %s47
      %s51 = sphi 0, %s50
      %s67 = sphi 0, %s51
      %s75 = sphi 0, %s77
      %s78 = sphi 0, %s75
      %s79 = sphi 0, %s78
      %s95 = sphi 0, %s79
      %s99 = sphi 0, %s99
      %s101 = sphi 0, %s99
      %s102 = sphi 0, %s101
      %s116 = sphi 0, %s102
      %s120 = sphi 0, %s120
      %s122 = sphi 0, %s120
      %s123 = sphi 0, %s122
      %s137 = sphi 0, %s123
      %s141 = sphi 0, %s141
      %s143 = sphi 0, %s141
      %s144 = sphi 0, %s143
      %s158 = sphi 0, %s144
      %s162 = sphi 0, %s162
      %s164 = sphi 0, %s162
      %s165 = sphi 0, %s164
      %s179 = sphi 0, %s165
      %s187 = sphi 0, %s189
      %s190 = sphi 0, %s187
      %s191 = sphi 0, %s190
      %s207 = sphi 0, %s191
    $region4: #{tpu_custom_call.1} parent=1 // loop_header_branch
      %26 = sbr.rel (%p24) target = $region8
    $region5: #{tpu_custom_call.1} parent=1 // loop_body
      %s28 = ssub.s32 %s23, 1
      %s29 = ssub.s32 %s23, 2
      %s36 = sadd.s32 1, %s31
      %p37 = scmp.ge.s32.totalorder %s36, 1
      %s38 = scalar_select %p37, 0, %s36
      %s39 = sadd.s32 1, %s30
      %s40 = scalar_select %p37, %s39, %s30
      %p41 = scmp.ge.s32.totalorder %s40, 2
      %s42 = scalar_select %p41, 0, %s40
      %s43 = ssub.s32 %s30, %s42
      %s44 = ssub.s32 %s31, %s38
      %s45 = sor.u32 %s43, %s44
      %p46 = scmp.eq.s32.totalorder %s45, 0
      %s48 = sadd.s32 %s47, 1
      %s49 = scalar_select %p46, %s47, %s48
      %p52 = pneg %p46
      %p53 = scmp.eq.s32.totalorder %s23, 1
      %p54 = por %p52, %p53
      %p55 = scmp.ne.s32.totalorder %s47, %s50
      %p56 = scmp.eq.s32.totalorder %s23, 0
      %p57 = por %p55, %p56
      %p58 = scmp.ne.s32.totalorder %s47, %s50
      %p59 = scmp.eq.s32.totalorder %s28, 1
      %p60 = por %p58, %p59
      %p61 = scmp.ne.s32.totalorder %s50, %s51
      %p62 = scmp.eq.s32.totalorder %s28, 0
      %p63 = por %p61, %p62
      %p64 = scmp.ne.s32.totalorder %s50, %s51
      %p65 = scmp.eq.s32.totalorder %s29, 1
      %p66 = por %p64, %p65
      %p68 = scmp.ne.s32.totalorder %s51, %s67
      %p69 = scmp.eq.s32.totalorder %s29, 0
      %p70 = por %p68, %p69
      %s71 = ssub.s32 %s30, %s42
      %s72 = ssub.s32 %s31, %s38
      %s73 = sor.u32 %s71, %s72
      %p74 = scmp.eq.s32.totalorder %s73, 0
      %s76 = sadd.s32 %s75, 1
      %s77 = scalar_select %p74, %s75, %s76
      %p80 = pneg %p74
      %p81 = scmp.eq.s32.totalorder %s23, 1
      %p82 = por %p80, %p81
      %p83 = scmp.ne.s32.totalorder %s75, %s78
      %p84 = scmp.eq.s32.totalorder %s23, 0
      %p85 = por %p83, %p84
      %p86 = scmp.ne.s32.totalorder %s75, %s78
      %p87 = scmp.eq.s32.totalorder %s28, 1
      %p88 = por %p86, %p87
      %p89 = scmp.ne.s32.totalorder %s78, %s79
      %p90 = scmp.eq.s32.totalorder %s28, 0
      %p91 = por %p89, %p90
      %p92 = scmp.ne.s32.totalorder %s78, %s79
      %p93 = scmp.eq.s32.totalorder %s29, 1
      %p94 = por %p92, %p93
      %p96 = scmp.ne.s32.totalorder %s79, %s95
      %p97 = scmp.eq.s32.totalorder %s29, 0
      %p98 = por %p96, %p97
      %s100 = sadd.s32 %s99, 1
      %p103 = scmp.eq.s32.totalorder %s23, 1
      %p104 = scmp.ne.s32.totalorder %s99, %s101
      %p105 = scmp.eq.s32.totalorder %s23, 0
      %p106 = por %p104, %p105
      %p107 = scmp.ne.s32.totalorder %s99, %s101
      %p108 = scmp.eq.s32.totalorder %s28, 1
      %p109 = por %p107, %p108
      %p110 = scmp.ne.s32.totalorder %s101, %s102
      %p111 = scmp.eq.s32.totalorder %s28, 0
      %p112 = por %p110, %p111
      %p113 = scmp.ne.s32.totalorder %s101, %s102
      %p114 = scmp.eq.s32.totalorder %s29, 1
      %p115 = por %p113, %p114
      %p117 = scmp.ne.s32.totalorder %s102, %s116
      %p118 = scmp.eq.s32.totalorder %s29, 0
      %p119 = por %p117, %p118
      %s121 = sadd.s32 %s120, 1
      %p124 = scmp.eq.s32.totalorder %s23, 1
      %p125 = scmp.ne.s32.totalorder %s120, %s122
      %p126 = scmp.eq.s32.totalorder %s23, 0
      %p127 = por %p125, %p126
      %p128 = scmp.ne.s32.totalorder %s120, %s122
      %p129 = scmp.eq.s32.totalorder %s28, 1
      %p130 = por %p128, %p129
      %p131 = scmp.ne.s32.totalorder %s122, %s123
      %p132 = scmp.eq.s32.totalorder %s28, 0
      %p133 = por %p131, %p132
      %p134 = scmp.ne.s32.totalorder %s122, %s123
      %p135 = scmp.eq.s32.totalorder %s29, 1
      %p136 = por %p134, %p135
      %p138 = scmp.ne.s32.totalorder %s123, %s137
      %p139 = scmp.eq.s32.totalorder %s29, 0
      %p140 = por %p138, %p139
      %s142 = sadd.s32 %s141, 1
      %p145 = scmp.eq.s32.totalorder %s23, 1
      %p146 = scmp.ne.s32.totalorder %s141, %s143
      %p147 = scmp.eq.s32.totalorder %s23, 0
      %p148 = por %p146, %p147
      %p149 = scmp.ne.s32.totalorder %s141, %s143
      %p150 = scmp.eq.s32.totalorder %s28, 1
      %p151 = por %p149, %p150
      %p152 = scmp.ne.s32.totalorder %s143, %s144
      %p153 = scmp.eq.s32.totalorder %s28, 0
      %p154 = por %p152, %p153
      %p155 = scmp.ne.s32.totalorder %s143, %s144
      %p156 = scmp.eq.s32.totalorder %s29, 1
      %p157 = por %p155, %p156
      %p159 = scmp.ne.s32.totalorder %s144, %s158
      %p160 = scmp.eq.s32.totalorder %s29, 0
      %p161 = por %p159, %p160
      %s163 = sadd.s32 %s162, 1
      %p166 = scmp.eq.s32.totalorder %s23, 1
      %p167 = scmp.ne.s32.totalorder %s162, %s164
      %p168 = scmp.eq.s32.totalorder %s23, 0
      %p169 = por %p167, %p168
      %p170 = scmp.ne.s32.totalorder %s162, %s164
      %p171 = scmp.eq.s32.totalorder %s28, 1
      %p172 = por %p170, %p171
      %p173 = scmp.ne.s32.totalorder %s164, %s165
      %p174 = scmp.eq.s32.totalorder %s28, 0
      %p175 = por %p173, %p174
      %p176 = scmp.ne.s32.totalorder %s164, %s165
      %p177 = scmp.eq.s32.totalorder %s29, 1
      %p178 = por %p176, %p177
      %p180 = scmp.ne.s32.totalorder %s165, %s179
      %p181 = scmp.eq.s32.totalorder %s29, 0
      %p182 = por %p180, %p181
      %s183 = ssub.s32 %s30, %s42
      %s184 = ssub.s32 %s31, %s38
      %s185 = sor.u32 %s183, %s184
      %p186 = scmp.eq.s32.totalorder %s185, 0
      %s188 = sadd.s32 %s187, 1
      %s189 = scalar_select %p186, %s187, %s188
      %p192 = pneg %p186
      %p193 = scmp.eq.s32.totalorder %s23, 1
      %p194 = por %p192, %p193
      %p195 = scmp.ne.s32.totalorder %s187, %s190
      %p196 = scmp.eq.s32.totalorder %s23, 0
      %p197 = por %p195, %p196
      %p198 = scmp.ne.s32.totalorder %s187, %s190
      %p199 = scmp.eq.s32.totalorder %s28, 1
      %p200 = por %p198, %p199
      %p201 = scmp.ne.s32.totalorder %s190, %s191
      %p202 = scmp.eq.s32.totalorder %s28, 0
      %p203 = por %p201, %p202
      %p204 = scmp.ne.s32.totalorder %s190, %s191
      %p205 = scmp.eq.s32.totalorder %s29, 1
      %p206 = por %p204, %p205
      %p208 = scmp.ne.s32.totalorder %s191, %s207
      %p209 = scmp.eq.s32.totalorder %s29, 0
      %p210 = por %p208, %p209
      %p211 = scmp.le.s32.totalorder 1, %s23
      %p212 = scmp.lt.s32.totalorder %s23, 3
      %p213 = pnand %p211, %p212
      %p214 = pneg %p213
      // Predicated region
      $region9: #{tpu_custom_call.1} parent=5 // pred_check
        _
      $region10: #{tpu_custom_call.1} parent=5 // pred_check_branch
        %216 = sbr.rel (%p213) target = $region12
      $region11: #{tpu_custom_call.1} parent=5 // pred_region
        %s217 = ssub.s32 %s23, 1
        // Predicated region
        $region13: #{tpu_custom_call.1} parent=11 // pred_check
          %p218 = pneg %p112
        $region14: #{tpu_custom_call.1} parent=11 // pred_check_branch
          %220 = sbr.rel (%p218) target = $region16
        $region15: #{tpu_custom_call.1} parent=11 // pred_region
          _
        $region16: #{tpu_custom_call.1} parent=11 // pred_fallthru
          _
        // Predicated region
        $region17: #{tpu_custom_call.1} parent=11 // pred_check
          %p221 = pneg %p133
        $region18: #{tpu_custom_call.1} parent=11 // pred_check_branch
          %223 = sbr.rel (%p221) target = $region20
        $region19: #{tpu_custom_call.1} parent=11 // pred_region
          _
        $region20: #{tpu_custom_call.1} parent=11 // pred_fallthru
          _
        // Predicated region
        $region21: #{tpu_custom_call.1} parent=11 // pred_check
          %p224 = pneg %p154
        $region22: #{tpu_custom_call.1} parent=11 // pred_check_branch
          %226 = sbr.rel (%p224) target = $region24
        $region23: #{tpu_custom_call.1} parent=11 // pred_region
          _
        $region24: #{tpu_custom_call.1} parent=11 // pred_fallthru
          _
        // Predicated region
        $region25: #{tpu_custom_call.1} parent=11 // pred_check
          %p227 = pneg %p175
        $region26: #{tpu_custom_call.1} parent=11 // pred_check_branch
          %229 = sbr.rel (%p227) target = $region28
        $region27: #{tpu_custom_call.1} parent=11 // pred_region
          _
        $region28: #{tpu_custom_call.1} parent=11 // pred_fallthru
          _
      $region12: #{tpu_custom_call.1} parent=5 // pred_fallthru
        _
      %p230 = scmp.lt.s32.totalorder %s23, 2
      // Predicated region
      $region29: #{tpu_custom_call.1} parent=5 // pred_check
        %p231 = pneg %p230
      $region30: #{tpu_custom_call.1} parent=5 // pred_check_branch
        %233 = sbr.rel (%p231) target = $region32
      $region31: #{tpu_custom_call.1} parent=5 // pred_region
        // Predicated region
        $region33: #{tpu_custom_call.1} parent=31 // pred_check
          %p234 = pneg %p57
        $region34: #{tpu_custom_call.1} parent=31 // pred_check_branch
          %236 = sbr.rel (%p234) target = $region36
        $region35: #{tpu_custom_call.1} parent=31 // pred_region
          %s237 = sand.u32 %s47, 1
          %s238 = scalar_lea.sflag [#allocation4], %s237
          %s239 = sand.u32 %s47, 1
          %s240 = smul.addr %s239, 32
          %s241 = scalar_lea.vmem [#allocation3], %s240
          %s242 = smul.u32 4, %s31
          %244 = vsyncadd %s238, 0
          %s245 = smul.addr %s30, 4
          %s246 = sadd.s32 %s242, %s245
          %s247 = smul.addr %s246, 8
          %s248 = scalar_lea.hbm %s0, %s247
          %s250 = sshll.u32 %s248, 4
          %s251 = int_to_ptr.hbm [resolvable:$true] %s250
          %s252 = sshll.u32 %s241, 4
          %s253 = int_to_ptr.vmem [resolvable:$true] %s252
          %255 = dma.hbm_to_vmem [thread:$0]  %s251, 512, %s253, %s238
        $region36: #{tpu_custom_call.1} parent=31 // pred_fallthru
          _
        // Predicated region
        $region37: #{tpu_custom_call.1} parent=31 // pred_check
          %p256 = pneg %p85
        $region38: #{tpu_custom_call.1} parent=31 // pred_check_branch
          %258 = sbr.rel (%p256) target = $region40
        $region39: #{tpu_custom_call.1} parent=31 // pred_region
          %s259 = sand.u32 %s75, 1
          %s260 = scalar_lea.sflag [#allocation7], %s259
          %s261 = sand.u32 %s75, 1
          %s262 = smul.addr %s261, 32
          %s263 = scalar_lea.vmem [#allocation6], %s262
          %s264 = smul.u32 4, %s31
          %266 = vsyncadd %s260, 0
          %s267 = smul.addr %s30, 4
          %s268 = sadd.s32 %s264, %s267
          %s269 = smul.addr %s268, 8
          %s270 = scalar_lea.hbm %s1, %s269
          %s272 = sshll.u32 %s270, 4
          %s273 = int_to_ptr.hbm [resolvable:$true] %s272
          %s274 = sshll.u32 %s263, 4
          %s275 = int_to_ptr.vmem [resolvable:$true] %s274
          %277 = dma.hbm_to_vmem [thread:$0]  %s273, 512, %s275, %s260
        $region40: #{tpu_custom_call.1} parent=31 // pred_fallthru
          _
      $region32: #{tpu_custom_call.1} parent=5 // pred_fallthru
        _
      %p278 = scmp.le.s32.totalorder 1, %s23
      %p279 = scmp.lt.s32.totalorder %s23, 3
      %p280 = pnand %p278, %p279
      %p281 = pneg %p280
      // Predicated region
      $region41: #{tpu_custom_call.1} parent=5 // pred_check
        _
      $region42: #{tpu_custom_call.1} parent=5 // pred_check_branch
        %283 = sbr.rel (%p280) target = $region44
      $region43: #{tpu_custom_call.1} parent=5 // pred_region
        %s284 = ssub.s32 %s23, 1
        %s285 = sand.u32 %s50, 1
        %s286 = scalar_lea.sflag [#allocation4], %s285
        %s287 = sand.u32 %s50, 1
        %s288 = smul.addr %s287, 32
        %s289 = scalar_lea.vmem [#allocation3], %s288
        // Predicated region
        $region45: #{tpu_custom_call.1} parent=43 // pred_check
          %p290 = pneg %p63
        $region46: #{tpu_custom_call.1} parent=43 // pred_check_branch
          %292 = sbr.rel (%p290) target = $region48
        $region47: #{tpu_custom_call.1} parent=43 // pred_region
          %294 = dma.done %s286, 512
        $region48: #{tpu_custom_call.1} parent=43 // pred_fallthru
          _
        %s295 = sand.u32 %s78, 1
        %s296 = scalar_lea.sflag [#allocation7], %s295
        %s297 = sand.u32 %s78, 1
        %s298 = smul.addr %s297, 32
        %s299 = scalar_lea.vmem [#allocation6], %s298
        // Predicated region
        $region49: #{tpu_custom_call.1} parent=43 // pred_check
          %p300 = pneg %p91
        $region50: #{tpu_custom_call.1} parent=43 // pred_check_branch
          %302 = sbr.rel (%p300) target = $region52
        $region51: #{tpu_custom_call.1} parent=43 // pred_region
          %304 = dma.done %s296, 512
        $region52: #{tpu_custom_call.1} parent=43 // pred_fallthru
          _
        %s305 = sand.u32 %s50, 1
        %s306 = scalar_lea.sflag [#allocation4], %s305
        %s307 = sand.u32 %s50, 1
        %s308 = smul.addr %s307, 32
        %s309 = scalar_lea.vmem [#allocation3], %s308
        %p310 = pneg %p63
        %p311 = pneg %p60
        %s312 = sand.u32 %s78, 1
        %s313 = scalar_lea.sflag [#allocation7], %s312
        %s314 = sand.u32 %s78, 1
        %s315 = smul.addr %s314, 32
        %s316 = scalar_lea.vmem [#allocation6], %s315
        %p317 = pneg %p91
        %p318 = pneg %p88
        %p319 = pneg %p112
        %p320 = pneg %p109
        %p321 = pneg %p133
        %p322 = pneg %p130
        %p323 = pneg %p154
        %p324 = pneg %p151
        %p325 = pneg %p175
        %p326 = pneg %p172
        %p327 = pneg %p203
        %p328 = pneg %p200
        %s329 = sand.u32 %s190, 1
        %s330 = scalar_lea.sflag [#allocation5], %s329
        %s331 = sand.u32 %s190, 1
        %s332 = smul.addr %s331, 32
        %s333 = scalar_lea.vmem [#allocation8], %s332
        %s334 = smul.u32 4, %s33
        %s335 = smul.u32 4, %s33
        %s336 = smul.u32 4, %s33
        %v337 = vld [vmem:[%s289] sm:$0xff]
        %v338 = vld [vmem:[%s289 + $0x8] sm:$0xff]
        %v339 = vld [vmem:[%s289 + $0x10] sm:$0xff]
        %v340 = vld [vmem:[%s289 + $0x18] sm:$0xff]
        %v341 = vld [vmem:[%s299] sm:$0xff]
        %v342 = vld [vmem:[%s299 + $0x8] sm:$0xff]
        %v343 = vld [vmem:[%s299 + $0x10] sm:$0xff]
        %v344 = vld [vmem:[%s299 + $0x18] sm:$0xff]
        %v345 = vld [vmem:[%s2] sm:$0xff]
        %v346 = vld [vmem:[%s2 + $0x8] sm:$0xff]
        %v347 = vld [vmem:[%s3] sm:$0xff]
        %v348 = vld [vmem:[%s3 + $0x8] sm:$0xff]
        %350 = vset.pattern.permute.xlu0 0
        %351 = vperm.xlu0 %350, %v347
        %v352 = vpop.permute.xlu0 %351
        %355 = vset.pattern.permute.xlu0 0
        %356 = vperm.xlu0 %355, %v348
        %v357 = vpop.permute.xlu0 %356
        %vm359 = vcmask 130048
        %v361 = vsel %vm359, %v345, 0
        %v364 = vsel %vm359, %v346, 0
        %366 = vmatpush.msra.mxu0 0.0
        %367 = vmatpush.msra.mxu0 0.0
        %368 = vmatpush.msra.mxu0 0.0
        %369 = vmatpush.msra.mxu0 0.0
        %370 = vmatpush.msra.mxu0 0.0
        %371 = vmatpush.msra.mxu0 0.0
        %372 = vmatpush.msra.mxu0 0.0
        %373 = vmatpush.msra.mxu0 0.0
        %374 = vmatpush.msra.mxu0 0.0
        %375 = vmatpush.msra.mxu0 0.0
        %376 = vmatpush.msra.mxu0 0.0
        %377 = vmatpush.msra.mxu0 0.0
        %378 = vmatpush.msra.mxu0 0.0
        %379 = vmatpush.msra.mxu0 0.0
        %380 = vmatpush.msra.mxu0 %v341
        %381 = vmatpush.msra.mxu0 %v337
        %382 = vmatmul.f32.gmra.mxu0 %v361
        %v383 = vpop.f32.mrf.mxu0
        %v384 = vadd.f32 %v352, %v383
        %385 = vmatmul.f32.gmra.mxu0 %v364
        %v386 = vpop.f32.mrf.mxu0
        %v387 = vadd.f32 %v357, %v386
        %388 = vdwg.mxu0
        %389 = vmatpush.msra.mxu0 0.0
        %390 = vmatpush.msra.mxu0 0.0
        %391 = vmatpush.msra.mxu0 0.0
        %392 = vmatpush.msra.mxu0 0.0
        %393 = vmatpush.msra.mxu0 0.0
        %394 = vmatpush.msra.mxu0 0.0
        %395 = vmatpush.msra.mxu0 0.0
        %396 = vmatpush.msra.mxu0 0.0
        %397 = vmatpush.msra.mxu0 0.0
        %398 = vmatpush.msra.mxu0 0.0
        %399 = vmatpush.msra.mxu0 0.0
        %400 = vmatpush.msra.mxu0 0.0
        %401 = vmatpush.msra.mxu0 0.0
        %402 = vmatpush.msra.mxu0 0.0
        %403 = vmatpush.msra.mxu0 %v342
        %404 = vmatpush.msra.mxu0 %v338
        %405 = vmatmul.f32.gmra.mxu0 %v361
        %v406 = vpop.f32.mrf.mxu0
        %v407 = vadd.f32 %v352, %v406
        %408 = vmatmul.f32.gmra.mxu0 %v364
        %v409 = vpop.f32.mrf.mxu0
        %v410 = vadd.f32 %v357, %v409
        %411 = vdwg.mxu0
        %412 = vmatpush.msra.mxu0 0.0
        %413 = vmatpush.msra.mxu0 0.0
        %414 = vmatpush.msra.mxu0 0.0
        %415 = vmatpush.msra.mxu0 0.0
        %416 = vmatpush.msra.mxu0 0.0
        %417 = vmatpush.msra.mxu0 0.0
        %418 = vmatpush.msra.mxu0 0.0
        %419 = vmatpush.msra.mxu0 0.0
        %420 = vmatpush.msra.mxu0 0.0
        %421 = vmatpush.msra.mxu0 0.0
        %422 = vmatpush.msra.mxu0 0.0
        %423 = vmatpush.msra.mxu0 0.0
        %424 = vmatpush.msra.mxu0 0.0
        %425 = vmatpush.msra.mxu0 0.0
        %426 = vmatpush.msra.mxu0 %v343
        %427 = vmatpush.msra.mxu0 %v339
        %428 = vmatmul.f32.gmra.mxu0 %v361
        %v429 = vpop.f32.mrf.mxu0
        %v430 = vadd.f32 %v352, %v429
        %431 = vmatmul.f32.gmra.mxu0 %v364
        %v432 = vpop.f32.mrf.mxu0
        %v433 = vadd.f32 %v357, %v432
        %434 = vdwg.mxu0
        %435 = vmatpush.msra.mxu0 0.0
        %436 = vmatpush.msra.mxu0 0.0
        %437 = vmatpush.msra.mxu0 0.0
        %438 = vmatpush.msra.mxu0 0.0
        %439 = vmatpush.msra.mxu0 0.0
        %440 = vmatpush.msra.mxu0 0.0
        %441 = vmatpush.msra.mxu0 0.0
        %442 = vmatpush.msra.mxu0 0.0
        %443 = vmatpush.msra.mxu0 0.0
        %444 = vmatpush.msra.mxu0 0.0
        %445 = vmatpush.msra.mxu0 0.0
        %446 = vmatpush.msra.mxu0 0.0
        %447 = vmatpush.msra.mxu0 0.0
        %448 = vmatpush.msra.mxu0 0.0
        %449 = vmatpush.msra.mxu0 %v344
        %450 = vmatpush.msra.mxu0 %v340
        %451 = vmatmul.f32.gmra.mxu0 %v361
        %v452 = vpop.f32.mrf.mxu0
        %v453 = vadd.f32 %v352, %v452
        %454 = vmatmul.f32.gmra.mxu0 %v364
        %v455 = vpop.f32.mrf.mxu0
        %v456 = vadd.f32 %v357, %v455
        %457 = vdwg.mxu0
        %v458 = vmax.f32 %v384, 0.0
        %v459 = vmax.f32 %v407, 0.0
        %v460 = vmax.f32 %v430, 0.0
        %v461 = vmax.f32 %v453, 0.0
        %v462 = vmax.f32 %v387, 0.0
        %v463 = vmax.f32 %v410, 0.0
        %v464 = vmax.f32 %v433, 0.0
        %v465 = vmax.f32 %v456, 0.0
        %v466 = vld [vmem:[%s4] sm:$0xff]
        %v467 = vld [vmem:[%s4 + $0x8] sm:$0xff]
        %469 = vset.pattern.permute.xlu0 0
        %470 = vperm.xlu0 %469, %v466
        %v471 = vpop.permute.xlu0 %470
        %474 = vset.pattern.permute.xlu0 0
        %475 = vperm.xlu0 %474, %v467
        %v476 = vpop.permute.xlu0 %475
        %v478 = vmul.f32 %v471, %v458
        %v479 = vmul.f32 %v471, %v459
        %v480 = vmul.f32 %v471, %v460
        %v481 = vmul.f32 %v471, %v461
        %v482 = vmul.f32 %v476, %v462
        %v483 = vmul.f32 %v476, %v463
        %v484 = vmul.f32 %v476, %v464
        %v485 = vmul.f32 %v476, %v465
        %v486 = vadd.f32 %v478, %v482
        %v487 = vrot.slane %v486, 4
        %v488 = vadd.f32 %v486, %v487
        %v489 = vrot.slane %v488, 2
        %v490 = vadd.f32 %v488, %v489
        %v491 = vrot.slane %v490, 1
        %v492 = vadd.f32 %v490, %v491
        %v493 = vadd.f32 %v479, %v483
        %v494 = vrot.slane %v493, 4
        %v495 = vadd.f32 %v493, %v494
        %v496 = vrot.slane %v495, 2
        %v497 = vadd.f32 %v495, %v496
        %v498 = vrot.slane %v497, 1
        %v499 = vadd.f32 %v497, %v498
        %v500 = vadd.f32 %v480, %v484
        %v501 = vrot.slane %v500, 4
        %v502 = vadd.f32 %v500, %v501
        %v503 = vrot.slane %v502, 2
        %v504 = vadd.f32 %v502, %v503
        %v505 = vrot.slane %v504, 1
        %v506 = vadd.f32 %v504, %v505
        %v507 = vadd.f32 %v481, %v485
        %v508 = vrot.slane %v507, 4
        %v509 = vadd.f32 %v507, %v508
        %v510 = vrot.slane %v509, 2
        %v511 = vadd.f32 %v509, %v510
        %v512 = vrot.slane %v511, 1
        %v513 = vadd.f32 %v511, %v512
        %v514 = vld [vmem:[#allocation2] sm:$0x1]
        %516 = vset.pattern.permute.xlu0 0
        %517 = vperm.xlu0 %516, %v514
        %v518 = vpop.permute.xlu0 %517
        %v520 = vperm.slane %v518, 0
        %v521 = vadd.f32 %v492, %v520
        %v522 = vadd.f32 %v499, %v520
        %v523 = vadd.f32 %v506, %v520
        %v524 = vadd.f32 %v513, %v520
        %v525 = vxor.u32 %v521, 2147483648
        %v526 = vxor.u32 %v522, 2147483648
        %v527 = vxor.u32 %v523, 2147483648
        %v528 = vxor.u32 %v524, 2147483648
        %v529 = vmul.f32 %v525, 1.442695
        %v530 = vpow.pop %v529
        %v531 = vmul.f32 %v526, 1.442695
        %v532 = vpow.pop %v531
        %v533 = vmul.f32 %v527, 1.442695
        %v534 = vpow.pop %v533
        %v535 = vmul.f32 %v528, 1.442695
        %v536 = vpow.pop %v535
        %v537 = vadd.f32 %v530, 1.0
        %v538 = vadd.f32 %v532, 1.0
        %v539 = vadd.f32 %v534, 1.0
        %v540 = vadd.f32 %v536, 1.0
        %v541 = vrcp.pop %v537
        %v542 = vmul.f32 %v537, %v541
        %v543 = vsub.f32 1.0, %v542
        %v544 = vmul.f32 %v541, %v543
        %v545 = vadd.f32 %v541, %v544
        %vm546 = vweird.f32 %v537
        %vm547 = vweird.f32 %v541
        %vm548 = vmor %vm546, %vm547
        %v549 = vsel %vm548, %v541, %v545
        %v550 = vand.u32 2147483647, %v537
        %vm551 = vcmp.eq.f32.partialorder %v550, 8.507059e+37
        %v552 = vand.u32 %v537, 2147483648
        %v553 = vor.u32 1.1754944e-38, %v552
        %v554 = vsel %vm551, %v553, %v549
        %v555 = vmul.f32 1.0, %v554
        %v556 = vrcp.pop %v538
        %v557 = vmul.f32 %v538, %v556
        %v558 = vsub.f32 1.0, %v557
        %v559 = vmul.f32 %v556, %v558
        %v560 = vadd.f32 %v556, %v559
        %vm561 = vweird.f32 %v538
        %vm562 = vweird.f32 %v556
        %vm563 = vmor %vm561, %vm562
        %v564 = vsel %vm563, %v556, %v560
        %v565 = vand.u32 2147483647, %v538
        %vm566 = vcmp.eq.f32.partialorder %v565, 8.507059e+37
        %v567 = vand.u32 %v538, 2147483648
        %v568 = vor.u32 1.1754944e-38, %v567
        %v569 = vsel %vm566, %v568, %v564
        %v570 = vmul.f32 1.0, %v569
        %v571 = vrcp.pop %v539
        %v572 = vmul.f32 %v539, %v571
        %v573 = vsub.f32 1.0, %v572
        %v574 = vmul.f32 %v571, %v573
        %v575 = vadd.f32 %v571, %v574
        %vm576 = vweird.f32 %v539
        %vm577 = vweird.f32 %v571
        %vm578 = vmor %vm576, %vm577
        %v579 = vsel %vm578, %v571, %v575
        %v580 = vand.u32 2147483647, %v539
        %vm581 = vcmp.eq.f32.partialorder %v580, 8.507059e+37
        %v582 = vand.u32 %v539, 2147483648
        %v583 = vor.u32 1.1754944e-38, %v582
        %v584 = vsel %vm581, %v583, %v579
        %v585 = vmul.f32 1.0, %v584
        %v586 = vrcp.pop %v540
        %v587 = vmul.f32 %v540, %v586
        %v588 = vsub.f32 1.0, %v587
        %v589 = vmul.f32 %v586, %v588
        %v590 = vadd.f32 %v586, %v589
        %vm591 = vweird.f32 %v540
        %vm592 = vweird.f32 %v586
        %vm593 = vmor %vm591, %vm592
        %v594 = vsel %vm593, %v586, %v590
        %v595 = vand.u32 2147483647, %v540
        %vm596 = vcmp.eq.f32.partialorder %v595, 8.507059e+37
        %v597 = vand.u32 %v540, 2147483648
        %v598 = vor.u32 1.1754944e-38, %v597
        %v599 = vsel %vm596, %v598, %v594
        %v600 = vmul.f32 1.0, %v599
        %v601 = vmul.f32 %v341, %v555
        %v602 = vmul.f32 %v342, %v570
        %v603 = vmul.f32 %v343, %v585
        %v604 = vmul.f32 %v344, %v600
        %605 = vst [vmem:[%s333] sm:$0xff] %v601
        %606 = vst [vmem:[%s333 + $0x8] sm:$0xff] %v602
        %607 = vst [vmem:[%s333 + $0x10] sm:$0xff] %v603
        %608 = vst [vmem:[%s333 + $0x18] sm:$0xff] %v604
        %s609 = sand.u32 %s190, 1
        %s610 = scalar_lea.sflag [#allocation5], %s609
        %s611 = sand.u32 %s190, 1
        %s612 = smul.addr %s611, 32
        %s613 = scalar_lea.vmem [#allocation8], %s612
        // Predicated region
        $region53: #{tpu_custom_call.1} parent=43 // pred_check
          %p614 = pneg %p200
        $region54: #{tpu_custom_call.1} parent=43 // pred_check_branch
          %616 = sbr.rel (%p614) target = $region56
        $region55: #{tpu_custom_call.1} parent=43 // pred_region
          %s617 = smul.u32 4, %s33
          %619 = vsyncadd %s610, 0
          %s620 = smul.addr %s32, 4
          %s621 = sadd.s32 %s617, %s620
          %s622 = smul.addr %s621, 8
          %s623 = scalar_lea.hbm %s6, %s622
          %s625 = sshll.u32 %s613, 4
          %s626 = int_to_ptr.vmem [resolvable:$true] %s625
          %s627 = sshll.u32 %s623, 4
          %s628 = int_to_ptr.hbm [resolvable:$true] %s627
          %630 = dma.vmem_to_hbm [thread:$0]  %s626, 512, %s628, %s610
        $region56: #{tpu_custom_call.1} parent=43 // pred_fallthru
          _
      $region44: #{tpu_custom_call.1} parent=5 // pred_fallthru
        _
      %p631 = scmp.le.s32.totalorder 2, %s23
      // Predicated region
      $region57: #{tpu_custom_call.1} parent=5 // pred_check
        %p632 = pneg %p631
      $region58: #{tpu_custom_call.1} parent=5 // pred_check_branch
        %634 = sbr.rel (%p632) target = $region60
      $region59: #{tpu_custom_call.1} parent=5 // pred_region
        %s635 = ssub.s32 %s23, 2
        // Predicated region
        $region61: #{tpu_custom_call.1} parent=59 // pred_check
          %p636 = pneg %p206
        $region62: #{tpu_custom_call.1} parent=59 // pred_check_branch
          %638 = sbr.rel (%p636) target = $region64
        $region63: #{tpu_custom_call.1} parent=59 // pred_region
          %s639 = sand.u32 %s191, 1
          %s640 = scalar_lea.sflag [#allocation5], %s639
          %s641 = sand.u32 %s191, 1
          %s642 = smul.addr %s641, 32
          %s643 = scalar_lea.vmem [#allocation8], %s642
          %645 = dma.done %s640, 512
        $region64: #{tpu_custom_call.1} parent=59 // pred_fallthru
          _
      $region60: #{tpu_custom_call.1} parent=5 // pred_fallthru
        _
    $region6: #{tpu_custom_call.1} parent=1 // loop_footer
      %s27 = sadd.s32 1, %s23
    $region7: #{tpu_custom_call.1} parent=1 // loop_footer_branch
      %22 = sbr.rel target = $region3
    $region8: #{tpu_custom_call.1} parent=1 // loop_exit
      _
    %646 = vsyncpa [#allocation4], 1
    %s647 = scalar_lea.sflag [#allocation4], 1
    %648 = vsyncpa %s647, 1
    %649 = vsyncpa [#allocation7], 1
    %s650 = scalar_lea.sflag [#allocation7], 1
    %651 = vsyncpa %s650, 1
    %652 = vsyncpa [#allocation5], 1
    %s653 = scalar_lea.sflag [#allocation5], 1
    %654 = vsyncpa %s653, 1

</llo_original>
